<compile_context>
chip_gen: v5e
topology: v5e:2x2
jax: 0.10.0
libtpu: 0.0.40
codegen_flags: <defaults>
</compile_context>

<pallas_src>
import functools

import jax
import jax.numpy as jnp
from jax.experimental import pallas as pl
from jax.experimental.pallas import tpu as pltpu


# ---------------------------------------------------------------------------
# Sizing helpers
# ---------------------------------------------------------------------------

def _round_up(x, m):
    return (x + m - 1) // m * m


def _cdiv(a, b):
    return -(-a // b)


def _vmem_capacity_bytes():
    try:
        return int(pltpu.get_tpu_info().vmem_capacity_bytes)
    except Exception:
        return 64 << 20  # v7x-sized conservative fallback


def _vmem_limit_bytes():
    # Raise the default scoped-VMEM limit (16/32 MiB) so the large
    # double-buffered tiles are accepted, but leave ~8 MiB of headroom for
    # compiler-internal scratch / semaphores / output buffers (matters on v7x,
    # which only has 64 MiB of VMEM per TensorCore).
    return int(min(_vmem_capacity_bytes() - (8 << 20), 100 << 20))


def _pick_batch_tile(batch, per_row_bytes, reserved_bytes=0):
    """Largest batch tile whose estimated working set fits comfortably in VMEM.

    `per_row_bytes` must include the double-buffered input streams *and* the
    in-kernel temporaries; `reserved_bytes` accounts for VMEM-resident tables.
    """
    if batch <= 128:
        return int(batch)                        # single exact block
    budget = min(_vmem_capacity_bytes() // 2, 48 << 20) - reserved_bytes
    bt = (max(budget, 0) // per_row_bytes) // 128 * 128
    # >1024-row tiles buy no extra HBM bandwidth (roofline is already ~85% at
    # 512-1024 rows) but double the VMEM pressure, so cap at 1024.
    bt = max(128, min(1024, bt))
    bt = min(bt, (batch // 128) * 128)           # never exceed the array
    if batch >= 256:
        # Force >=2 grid steps so dimension_semantics=("parallel",) can shard
        # the grid across both of v7x's TensorCores (no effect on v5e/v6e).
        bt = min(bt, max(128, _round_up(_cdiv(batch, 2), 128)))
    return int(bt)


def _compute_dtype(in_dtype):
    """Product dtype for the streaming kernels.

    f32 inputs stay f32.  bf16 inputs keep the triple product in bf16 on chips
    with a bf16 VPU (v6e / v7x) — halves vreg / VMEM temp pressure — and are
    upcast to f32 on v5e and older.  Accumulation is always f32.
    """
    if jnp.dtype(in_dtype) != jnp.dtype(jnp.bfloat16):
        return jnp.float32
    try:
        kind = jax.devices()[0].device_kind.lower()
    except Exception:
        return jnp.float32
    if ("v6" in kind) or ("v7" in kind) or ("7x" in kind):
        return jnp.bfloat16
    return jnp.float32


# ---------------------------------------------------------------------------
# Plain streaming path: multiply-reduce over three pre-gathered row streams
# ---------------------------------------------------------------------------

def _mul_reduce_kernel(h_ref, r_ref, t_ref, o_ref, *, compute_dtype):
    # Memory-bound elementwise triple product (VPU) + lane reduction (XLU).
    cd = compute_dtype
    prod = h_ref[...].astype(cd) * r_ref[...].astype(cd) * t_ref[...].astype(cd)
    scores = jnp.sum(prod.astype(jnp.float32), axis=-1)      # f32 accumulation
    o_ref[...] = scores.reshape(o_ref.shape)                  # lane-dense (1,1,b)


def _distmult_streaming(h, r, t, *, b_tile=None):
    batch, dim = int(h.shape[0]), int(h.shape[1])
    cd = _compute_dtype(h.dtype)
    if b_tile is None:
        per_row = (3 * 2 * dim * h.dtype.itemsize        # 3 double-buffered streams
                   + 3 * dim * jnp.dtype(cd).itemsize    # in-kernel casts
                   + 2 * dim * 4                         # product + f32 copy
                   + 2 * 4)                              # output row (x2 buffers)
        b_tile = _pick_batch_tile(batch, per_row)
    grid = _cdiv(batch, b_tile)

    emb_spec = pl.BlockSpec((b_tile, dim), lambda i: (i, 0))
    out = pl.pallas_call(
        functools.partial(_mul_reduce_kernel, compute_dtype=cd),
        out_shape=jax.ShapeDtypeStruct((grid, 1, b_tile), jnp.float32),
        grid_spec=pltpu.PrefetchScalarGridSpec(
            num_scalar_prefetch=0,
            grid=(grid,),
            in_specs=[emb_spec, emb_spec, emb_spec],
            out_specs=pl.BlockSpec((1, 1, b_tile), lambda i: (i, 0, 0)),
        ),
        compiler_params=pltpu.CompilerParams(
            dimension_semantics=("parallel",),
            vmem_limit_bytes=_vmem_limit_bytes(),
        ),
    )(h, r, t)
    # Scores past `batch` come from partial edge blocks and are sliced off.
    return out.reshape(-1)[:batch]


# ---------------------------------------------------------------------------
# Rel-fused streaming path: h/t streamed, tiny relation table VMEM-resident
# ---------------------------------------------------------------------------

def _stream_rel_fused_kernel(ridx_ref, h_ref, t_ref, rel_ref, o_ref, *,
                             compute_dtype, n_rel):
    cd = compute_dtype
    h = h_ref[...].astype(cd)                   # (b_tile, dim)
    t = t_ref[...].astype(cd)
    rel = rel_ref[...].astype(cd)               # (n_rel, dim), VMEM-resident
    ridx = ridx_ref[...]                        # (b_tile, 1) int32
    # Exact in-kernel relation gather: unrolled masked select over the handful
    # of relation rows.  Compare-only, so garbage indices in partial edge
    # blocks cannot read out of bounds — they just leave r = 0.
    r = jnp.zeros_like(h)
    for k in range(n_rel):
        r = jnp.where(ridx == k, rel[k:k + 1, :], r)
    prod = h * r * t
    scores = jnp.sum(prod.astype(jnp.float32), axis=-1)       # (b_tile,)
    o_ref[...] = scores.reshape(o_ref.shape)                   # lane-dense (1,1,b)


def _distmult_stream_rel_fused(h, t, rel_emb, rel_idx, *, b_tile=None):
    batch, dim = int(h.shape[0]), int(h.shape[1])
    n_rel = int(rel_emb.shape[0])
    cd = _compute_dtype(h.dtype)
    if b_tile is None:
        per_row = (2 * 2 * dim * h.dtype.itemsize        # h, t double-buffered
                   + 2 * 128 * 4                         # (b,1) idx col (lane-padded), x2
                   + 3 * dim * jnp.dtype(cd).itemsize    # h/t casts + r
                   + 2 * dim * 4                         # product + f32 copy
                   + 2 * 4)
        b_tile = _pick_batch_tile(batch, per_row)
    grid = _cdiv(batch, b_tile)

    ridx_col = rel_idx.astype(jnp.int32).reshape(batch, 1)
    emb_spec = pl.BlockSpec((b_tile, dim), lambda i: (i, 0))
    out = pl.pallas_call(
        functools.partial(_stream_rel_fused_kernel, compute_dtype=cd, n_rel=n_rel),
        out_shape=jax.ShapeDtypeStruct((grid, 1, b_tile), jnp.float32),
        grid_spec=pltpu.PrefetchScalarGridSpec(
            num_scalar_prefetch=0,
            grid=(grid,),
            in_specs=[pl.BlockSpec((b_tile, 1), lambda i: (i, 0)),   # rel idx
                      emb_spec, emb_spec,                            # h, t
                      # Full-array block + constant index map: copied to VMEM
                      # once and kept resident across all grid steps.
                      pl.BlockSpec((n_rel, dim), lambda i: (0, 0))],
            out_specs=pl.BlockSpec((1, 1, b_tile), lambda i: (i, 0, 0)),
        ),
        compiler_params=pltpu.CompilerParams(
            dimension_semantics=("parallel",),
            vmem_limit_bytes=_vmem_limit_bytes(),
        ),
    )(ridx_col, h, t, rel_emb)
    return out.reshape(-1)[:batch]


# ---------------------------------------------------------------------------
# Fused path: in-kernel one-hot MXU gather from VMEM-resident tables
# ---------------------------------------------------------------------------

def _pad_last(x, multiple):
    c = int(x.shape[-1])
    cp = _round_up(c, multiple)
    if cp != c:
        x = jnp.pad(x, ((0, 0), (0, cp - c)))
    return x


def _fused_gather_kernel(hidx_ref, tidx_ref, ridx_ref, node_t_ref, rel_t_ref, o_ref):
    b = hidx_ref.shape[1]
    n_node = node_t_ref.shape[1]
    n_rel = rel_t_ref.shape[1]
    tdt = node_t_ref.dtype
    one, zero = jnp.ones((), tdt), jnp.zeros((), tdt)

    # One (n_node, b) iota shared by the head and tail one-hots (JAX does not
    # CSE broadcast_in_dim, so building it once saves a full VALU pass).
    node_iota = jax.lax.broadcasted_iota(jnp.int32, (n_node, b), 0)
    rel_iota = jax.lax.broadcasted_iota(jnp.int32, (n_rel, b), 0)
    oh_h = jnp.where(hidx_ref[...] == node_iota, one, zero)      # (n_node, b)
    oh_t = jnp.where(tidx_ref[...] == node_iota, one, zero)
    oh_r = jnp.where(ridx_ref[...] == rel_iota, one, zero)       # (n_rel, b)

    # One-hot row gather on the otherwise-idle MXU.  Tables are pre-transposed
    # to (dim, n), so gathered rows land directly as lane-dense (dim, b) and
    # the final reduction is over sublanes — no relayout needed.  Exact for
    # bf16 tables: one-hot entries are 0/1 and accumulation is f32.
    h = jnp.dot(node_t_ref[...], oh_h, preferred_element_type=jnp.float32)
    t = jnp.dot(node_t_ref[...], oh_t, preferred_element_type=jnp.float32)
    r = jnp.dot(rel_t_ref[...], oh_r, preferred_element_type=jnp.float32)

    scores = jnp.sum(h * r * t, axis=0)              # (b,), already lane-dense
    o_ref[...] = scores.reshape(o_ref.shape)         # (1, 1, b_tile)


def _distmult_fused(node_emb, rel_emb, head_idx, tail_idx, rel_idx, *, b_tile=None):
    batch = int(head_idx.shape[0])
    dim = int(node_emb.shape[1])
    dt = node_emb.dtype

    # Pre-transpose (and zero-pad the contraction dim to a lane multiple) once
    # outside the kernel; the tables are tiny and stay VMEM-resident.  Padded
    # columns are all-zero, so out-of-range / garbage indices contribute 0.
    node_t = _pad_last(node_emb.T, 128)              # (dim, n_node_pad)
    rel_t = _pad_last(rel_emb.T, 128)                # (dim, n_rel_pad)
    n_node_p, n_rel_p = int(node_t.shape[1]), int(rel_t.shape[1])

    def vmem_bytes(a):
        return _round_up(int(a.shape[0]), 8) * int(a.shape[1]) * dt.itemsize

    # Resident tables are double-buffered by default even though their block
    # never changes (pipeline_mode=pl.Buffered(1) would halve this; kept off
    # for portability and compensated for in the budget instead).
    reserved = 2 * (vmem_bytes(node_t) + vmem_bytes(rel_t))
    if b_tile is None:
        per_row = (3 * 2 * 8 * 4                             # (1,b) idx blocks, x2 buffers
                   + (2 * n_node_p + n_rel_p) * dt.itemsize  # one-hot operands
                   + 4 * dim * 4                             # gathered h/r/t + product (f32)
                   + 2 * 4)
        b_tile = _pick_batch_tile(batch, per_row, reserved_bytes=reserved)
    grid = _cdiv(batch, b_tile)

    def row(idx):
        return idx.astype(jnp.int32).reshape(1, batch)       # lane-dense index row

    idx_spec = pl.BlockSpec((1, b_tile), lambda i: (0, i))
    node_spec = pl.BlockSpec((dim, n_node_p), lambda i: (0, 0))    # VMEM-resident
    rel_spec = pl.BlockSpec((dim, n_rel_p), lambda i: (0, 0))      # VMEM-resident

    out = pl.pallas_call(
        _fused_gather_kernel,
        out_shape=jax.ShapeDtypeStruct((grid, 1, b_tile), jnp.float32),
        grid_spec=pltpu.PrefetchScalarGridSpec(
            num_scalar_prefetch=0,
            grid=(grid,),
            in_specs=[idx_spec, idx_spec, idx_spec, node_spec, rel_spec],
            out_specs=pl.BlockSpec((1, 1, b_tile), lambda i: (i, 0, 0)),
        ),
        compiler_params=pltpu.CompilerParams(
            dimension_semantics=("parallel",),
            vmem_limit_bytes=_vmem_limit_bytes(),
        ),
    )(row(head_idx), row(tail_idx), row(rel_idx), node_t, rel_t)
    return out.reshape(-1)[:batch]


# ---------------------------------------------------------------------------
# Public entry point (DistMult.forward)
# ---------------------------------------------------------------------------

_REL_FUSE_MAX = 8   # unrolled in-kernel relation select used up to this many relations


def distmult_scores(node_emb, rel_emb, head_idx, tail_idx, rel_idx,
                    *, b_tile=None, fuse_gather=None, fuse_rel=None):
    """DistMult scores: sum(node_emb[h] * rel_emb[r] * node_emb[t], axis=-1)."""
    n_node = int(node_emb.shape[0])
    n_rel = int(rel_emb.shape[0])
    table_bytes = (node_emb.size + rel_emb.size) * node_emb.dtype.itemsize
    if fuse_gather is None:
        # Auto-fuse only for modest 16-bit tables: the one-hot MXU gather is
        # exact for bf16 (f32 tables would need precision=HIGHEST) and the
        # default-double-buffered resident copies must leave v7x VMEM headroom.
        fuse_gather = (node_emb.dtype == jnp.bfloat16
                       and rel_emb.dtype == node_emb.dtype
                       and (n_node + n_rel) <= 1024
                       and table_bytes <= (4 << 20))
    if fuse_gather:
        return _distmult_fused(node_emb, rel_emb, head_idx, tail_idx, rel_idx,
                               b_tile=b_tile)

    # Large node table: let XLA gather the h/t rows and stream them in big
    # batch tiles.
    # TODO(synk): a fully fused gather (node table in pl.ANY HBM + per-row
    # double-buffered make_async_copy DMAs driven by scalar-prefetched index
    # arrays) would remove this h/t HBM round trip too, at the cost of many
    # small row DMAs; not implemented here.
    h = jnp.take(node_emb, head_idx.astype(jnp.int32), axis=0)
    t = jnp.take(node_emb, tail_idx.astype(jnp.int32), axis=0)
    if fuse_rel is None:
        fuse_rel = n_rel <= _REL_FUSE_MAX
    if fuse_rel:
        # Keep the tiny relation table VMEM-resident and gather r in-kernel:
        # one fewer streamed (batch, dim) array and no HBM round trip for the
        # gathered relation rows.
        return _distmult_stream_rel_fused(h, t, rel_emb, rel_idx, b_tile=b_tile)
    r = jnp.take(rel_emb, rel_idx.astype(jnp.int32), axis=0)
    return _distmult_streaming(h, r, t, b_tile=b_tile)


def xavier_uniform(key, shape):
    fan_in, fan_out = shape
    bound = (6.0 / (fan_in + fan_out)) ** 0.5
    return jax.random.uniform(key, shape, jnp.float32, minval=-bound, maxval=bound)


if __name__ == "__main__":
    # Small DistMult instance matching the module: n_nodes entities, 2 relations.
    n_nodes, n_relations, embedding_dim = 64, 2, 128
    batch = 8

    key = jax.random.PRNGKey(0)
    k_node, k_rel, k_h, k_t, k_r = jax.random.split(key, 5)

    node_embedding = xavier_uniform(k_node, (n_nodes, embedding_dim))
    relation_embedding = xavier_uniform(k_rel, (n_relations, embedding_dim))

    head_indices = jax.random.randint(k_h, (batch,), 0, n_nodes, dtype=jnp.int32)
    tail_indices = jax.random.randint(k_t, (batch,), 0, n_nodes, dtype=jnp.int32)
    relation_indices = jax.random.randint(k_r, (batch,), 0, n_relations,
                                          dtype=jnp.int32)

    ref = jnp.sum(node_embedding[head_indices]
                  * relation_embedding[relation_indices]
                  * node_embedding[tail_indices], axis=-1)

    # Path 2: f32 tables -> XLA h/t gather + rel-fused streaming kernel.
    scores = jax.block_until_ready(
        distmult_scores(node_embedding, relation_embedding,
                        head_indices, tail_indices, relation_indices))
    assert scores.shape == (batch,)
    assert jnp.allclose(scores, ref, atol=1e-5, rtol=1e-5), \
        "rel-fused streaming mismatch"

    # Path 3: plain streaming fallback (all three gathered arrays streamed).
    scores_plain = jax.block_until_ready(
        distmult_scores(node_embedding, relation_embedding,
                        head_indices, tail_indices, relation_indices,
                        fuse_rel=False))
    assert jnp.allclose(scores_plain, ref, atol=1e-5, rtol=1e-5), \
        "streaming mismatch"

    # Path 1: bf16 tables (half the HBM bytes) -> fully fused in-kernel gather.
    node_bf16 = node_embedding.astype(jnp.bfloat16)
    rel_bf16 = relation_embedding.astype(jnp.bfloat16)
    scores_fused = jax.block_until_ready(
        distmult_scores(node_bf16, rel_bf16,
                        head_indices, tail_indices, relation_indices))
    ref_bf16 = jnp.sum(node_bf16[head_indices].astype(jnp.float32)
                       * rel_bf16[relation_indices].astype(jnp.float32)
                       * node_bf16[tail_indices].astype(jnp.float32), axis=-1)
    assert scores_fused.shape == (batch,)
    assert jnp.allclose(scores_fused, ref_bf16, atol=1e-4, rtol=1e-4), \
        "fused mismatch"

    print("KERNEL_OK")
</pallas_src>

<mosaic_0001>
module attributes {stable_mosaic.version = 11 : i64} {
  func.func @_stream_rel_fused_kernel(%arg0: i32, %arg1: memref<8x1xi32, #tpu.memory_space<vmem>>, %arg2: memref<8x128xf32, #tpu.memory_space<vmem>>, %arg3: memref<8x128xf32, #tpu.memory_space<vmem>>, %arg4: memref<2x128xf32, #tpu.memory_space<vmem>>, %arg5: memref<1x1x8xf32, #tpu.memory_space<vmem>>) attributes {dimension_semantics = [#tpu.dimension_semantics<parallel>], iteration_bounds = array<i64: 1>, scalar_prefetch = 0 : i64, scratch_operands = 0 : i64, tpu.core_type = #tpu.core_type<tc>, window_params = [{transform_indices = @transform_0, window_bounds = array<i64: 8, 1>}, {transform_indices = @transform_1, window_bounds = array<i64: 8, 128>}, {transform_indices = @transform_2, window_bounds = array<i64: 8, 128>}, {pipeline_mode = #tpu.pipeline_mode<synchronous>, transform_indices = @transform_3, window_bounds = array<i64: 2, 128>}, {transform_indices = @transform_4, window_bounds = array<i64: 1, 1, 8>}]} {
    %c0 = arith.constant 0 : index
    %c0_0 = arith.constant 0 : index
    %0 = vector.load %arg2[%c0, %c0_0] : memref<8x128xf32, #tpu.memory_space<vmem>>, vector<8x128xf32>
    %c0_1 = arith.constant 0 : index
    %c0_2 = arith.constant 0 : index
    %1 = vector.load %arg3[%c0_1, %c0_2] : memref<8x128xf32, #tpu.memory_space<vmem>>, vector<8x128xf32>
    %c0_3 = arith.constant 0 : index
    %c0_4 = arith.constant 0 : index
    %2 = vector.load %arg4[%c0_3, %c0_4] : memref<2x128xf32, #tpu.memory_space<vmem>>, vector<2x128xf32>
    %c0_5 = arith.constant 0 : index
    %c0_6 = arith.constant 0 : index
    %3 = vector.load %arg1[%c0_5, %c0_6] : memref<8x1xi32, #tpu.memory_space<vmem>>, vector<8x1xi32>
    %cst = arith.constant 0.000000e+00 : f32
    %4 = vector.broadcast %cst : f32 to vector<8x128xf32>
    %c0_i32 = arith.constant 0 : i32
    %5 = vector.broadcast %c0_i32 : i32 to vector<8x1xi32>
    %6 = arith.cmpi eq, %3, %5 : vector<8x1xi32>
    %7 = vector.extract_strided_slice %2 {offsets = [0, 0], sizes = [1, 128], strides = [1, 1]} : vector<2x128xf32> to vector<1x128xf32>
    %8 = vector.shape_cast %6 : vector<8x1xi1> to vector<8x1xi1>
    %9 = vector.broadcast %8 : vector<8x1xi1> to vector<8x128xi1>
    %10 = vector.shape_cast %7 : vector<1x128xf32> to vector<1x128xf32>
    %11 = vector.broadcast %10 : vector<1x128xf32> to vector<8x128xf32>
    %12 = arith.select %9, %11, %4 : vector<8x128xi1>, vector<8x128xf32>
    %c1_i32 = arith.constant 1 : i32
    %13 = vector.broadcast %c1_i32 : i32 to vector<8x1xi32>
    %14 = arith.cmpi eq, %3, %13 : vector<8x1xi32>
    %15 = vector.extract_strided_slice %2 {offsets = [1, 0], sizes = [1, 128], strides = [1, 1]} : vector<2x128xf32> to vector<1x128xf32>
    %16 = vector.shape_cast %14 : vector<8x1xi1> to vector<8x1xi1>
    %17 = vector.broadcast %16 : vector<8x1xi1> to vector<8x128xi1>
    %18 = vector.shape_cast %15 : vector<1x128xf32> to vector<1x128xf32>
    %19 = vector.broadcast %18 : vector<1x128xf32> to vector<8x128xf32>
    %20 = arith.select %17, %19, %12 : vector<8x128xi1>, vector<8x128xf32>
    %21 = arith.mulf %0, %20 : vector<8x128xf32>
    %22 = arith.mulf %21, %1 : vector<8x128xf32>
    %cst_7 = arith.constant dense<0.000000e+00> : vector<8xf32>
    %23 = vector.multi_reduction <add>, %22, %cst_7 [1] : vector<8x128xf32> to vector<8xf32>
    %24 = vector.shape_cast %23 : vector<8xf32> to vector<1x1x8xf32>
    %c0_8 = arith.constant 0 : index
    %c0_9 = arith.constant 0 : index
    %c0_10 = arith.constant 0 : index
    %25 = vector.load %arg5[%c0_8, %c0_9, %c0_10] : memref<1x1x8xf32, #tpu.memory_space<vmem>>, vector<1x1x8xf32>
    tpu.vector_store %arg5[%c0_8, %c0_9, %c0_10], %24 {strides = array<i32>} : memref<1x1x8xf32, #tpu.memory_space<vmem>>, vector<1x1x8xf32>,
    return
  }
  func.func @transform_0(%arg0: i32) -> (i32, i32) {
    %c0_i32 = arith.constant 0 : i32
    %c0_i32_0 = arith.constant 0 : i32
    return %arg0, %c0_i32 : i32, i32
  }
  func.func @transform_1(%arg0: i32) -> (i32, i32) {
    %c0_i32 = arith.constant 0 : i32
    %c0_i32_0 = arith.constant 0 : i32
    return %arg0, %c0_i32 : i32, i32
  }
  func.func @transform_2(%arg0: i32) -> (i32, i32) {
    %c0_i32 = arith.constant 0 : i32
    %c0_i32_0 = arith.constant 0 : i32
    return %arg0, %c0_i32 : i32, i32
  }
  func.func @transform_3(%arg0: i32) -> (i32, i32) {
    %c0_i32 = arith.constant 0 : i32
    %c0_i32_0 = arith.constant 0 : i32
    %c0_i32_1 = arith.constant 0 : i32
    return %c0_i32, %c0_i32_0 : i32, i32
  }
  func.func @transform_4(%arg0: i32) -> (i32, i32, i32) {
    %c0_i32 = arith.constant 0 : i32
    %c0_i32_0 = arith.constant 0 : i32
    %c0_i32_1 = arith.constant 0 : i32
    return %arg0, %c0_i32, %c0_i32_0 : i32, i32, i32
  }
}

</mosaic_0001>

<llo_original>
// kernel: tpu_custom_call.1
$region0: #{tpu_custom_call.1}
  #allocation0 [shape = 'u32[]', space=smem, size = 0x4, offset = 0x4, fixed_abs, tag = 'smem constant byte address 0x4 - core index']
  #allocation1 [shape = 'u32[72,128]{1,0:T(1,128)}', space=vmem, size = 0x9000, scoped, tag = 'internal scratch']
  %s0 = inlined_call_operand.vmem [shape: s32[8,1], index: 0, kind: input, shape index: {}]
  %s1 = inlined_call_operand.vmem [shape: f32[8,128], index: 1, kind: input, shape index: {}]
  %s2 = inlined_call_operand.hbm [shape: f32[8,128], index: 2, kind: input, shape index: {}]
  %s3 = inlined_call_operand.vmem [shape: f32[2,128], index: 3, kind: input, shape index: {}]
  %s4 = inlined_call_operand.hbm [shape: f32[1,1,8], index: 4, kind: output, shape index: {}]
  %s5 = sld [smem:[#allocation0]]
  $region30: #{tpu_custom_call.1} parent=0
    _
  %s7 = ssub.s32 1, %s5
  %s8 = scalar_select 0, %s7, %s5
  $region1: #{tpu_custom_call.1} parent=0
    #allocation2 [shape = 'u8[4096]{0}', space=vmem, size = 0x1000, scoped, tag = 'input window, operand 2, single buffered']
    #allocation3 [shape = 's32[1]{0}', space=sflag, size = 0x4, scoped, tag = 'scoped memory for tpu_custom_call.1']
    #allocation4 [shape = 's32[1]{0}', space=sflag, size = 0x4, scoped, tag = 'scoped memory for tpu_custom_call.1']
    #allocation5 [shape = 'u8[512]{0}', space=vmem, size = 0x400, scoped, tag = 'output window, operand 0, single buffered']
    %9 = vsyncpa [#allocation3], 0
    %10 = vsyncpa [#allocation4], 0
    // Predicated region
    $region2: #{tpu_custom_call.1} parent=1 // pred_check
      _
    $region3: #{tpu_custom_call.1} parent=1 // pred_check_branch
      %12 = sbr.rel (0) target = $region5
    $region4: #{tpu_custom_call.1} parent=1 // pred_region
      _
    $region5: #{tpu_custom_call.1} parent=1 // pred_fallthru
      _
    // Predicated region
    $region6: #{tpu_custom_call.1} parent=1 // pred_check
      _
    $region7: #{tpu_custom_call.1} parent=1 // pred_check_branch
      %14 = sbr.rel (0) target = $region9
    $region8: #{tpu_custom_call.1} parent=1 // pred_region
      _
    $region9: #{tpu_custom_call.1} parent=1 // pred_fallthru
      _
    // Predicated region
    $region10: #{tpu_custom_call.1} parent=1 // pred_check
      _
    $region11: #{tpu_custom_call.1} parent=1 // pred_check_branch
      %16 = sbr.rel (0) target = $region13
    $region12: #{tpu_custom_call.1} parent=1 // pred_region
      %18 = vsyncadd [#allocation3], 0
      %s20 = sshll.u32 %s2, 4
      %s21 = int_to_ptr.hbm [resolvable:$true] %s20
      %s22 = sshll.u32 [#allocation2], 4
      %s23 = int_to_ptr.vmem [resolvable:$true] %s22
      %25 = dma.hbm_to_vmem [thread:$0]  %s21, 128, %s23, [#allocation3]
    $region13: #{tpu_custom_call.1} parent=1 // pred_fallthru
      _
    // Predicated region
    $region14: #{tpu_custom_call.1} parent=1 // pred_check
      _
    $region15: #{tpu_custom_call.1} parent=1 // pred_check_branch
      %27 = sbr.rel (0) target = $region17
    $region16: #{tpu_custom_call.1} parent=1 // pred_region
      _
    $region17: #{tpu_custom_call.1} parent=1 // pred_fallthru
      _
    // Predicated region
    $region18: #{tpu_custom_call.1} parent=1 // pred_check
      _
    $region19: #{tpu_custom_call.1} parent=1 // pred_check_branch
      %29 = sbr.rel (0) target = $region21
    $region20: #{tpu_custom_call.1} parent=1 // pred_region
      %31 = dma.done [#allocation3], 128
    $region21: #{tpu_custom_call.1} parent=1 // pred_fallthru
      _
    %v32 = vld [vmem:[%s1] sm:$0xff]
    %v33 = vld [vmem:[#allocation2] sm:$0xff]
    %v34 = vld [vmem:[%s3] sm:$0x3]
    %v35 = vld [vmem:[%s0] sm:$0xff]
    %vm36 = vcmp.eq.s32.totalorder %v35, 0
    %v37 = vsel %vm36, 1, 0
    %38 = vset.pattern.permute.xlu0 0
    %39 = vperm.xlu0 %38, %v37
    %v40 = vpop.permute.xlu0 %39
    %vm41 = vcmp.eq.s32.totalorder %v40, 1
    %v42 = vperm.slane %v34, 0
    %v43 = vsel %vm41, %v42, 0.0
    %vm44 = vcmp.eq.s32.totalorder %v35, 1
    %v45 = vsel %vm44, 1, 0
    %46 = vset.pattern.permute.xlu0 0
    %47 = vperm.xlu0 %46, %v45
    %v48 = vpop.permute.xlu0 %47
    %vm49 = vcmp.eq.s32.totalorder %v48, 1
    %v50 = vperm.slane %v34, 1
    %v51 = vsel %vm49, %v50, %v43
    %v52 = vmul.f32 %v32, %v51
    %v53 = vmul.f32 %v52, %v33
    %54 = vadd.xlane.f32.xlu0 %v53
    %v55 = vpop.xlane.xlu0 %54
    %v57 = vlaneseq
    %v58 = vand.u32 %v57, 127
    %v59 = vperm.slane %v55, %v58
    %vm61 = vcmask 57344
    %62 = vst.msk [vmem:[#allocation5] sm:$0x1] %vm61, %v59
    // Predicated region
    $region22: #{tpu_custom_call.1} parent=1 // pred_check
      _
    $region23: #{tpu_custom_call.1} parent=1 // pred_check_branch
      %64 = sbr.rel (0) target = $region25
    $region24: #{tpu_custom_call.1} parent=1 // pred_region
      %66 = vsyncadd [#allocation4], 0
      %s68 = sshll.u32 [#allocation5], 4
      %s69 = int_to_ptr.vmem [resolvable:$true] %s68
      %s70 = sshll.u32 %s4, 4
      %s71 = int_to_ptr.hbm [resolvable:$true] %s70
      %73 = dma.vmem_to_hbm [thread:$0]  %s69, 16, %s71, [#allocation4]
    $region25: #{tpu_custom_call.1} parent=1 // pred_fallthru
      _
    // Predicated region
    $region26: #{tpu_custom_call.1} parent=1 // pred_check
      _
    $region27: #{tpu_custom_call.1} parent=1 // pred_check_branch
      %75 = sbr.rel (0) target = $region29
    $region28: #{tpu_custom_call.1} parent=1 // pred_region
      %77 = dma.done [#allocation4], 16
    $region29: #{tpu_custom_call.1} parent=1 // pred_fallthru
      _
    %78 = vsyncpa [#allocation3], 1
    %79 = vsyncpa [#allocation4], 1

</llo_original>
